<compile_context>
chip_gen: v5e
topology: v5e:2x2
jax: 0.10.0
libtpu: 0.0.40
codegen_flags: <defaults>
</compile_context>

<pallas_src>
import functools

import jax
import jax.numpy as jnp
from jax.experimental import pallas as pl
from jax.experimental.pallas import tpu as pltpu


def _round_up(x, m):
    return ((x + m - 1) // m) * m


def _vmem_limit_bytes():
    limit = 48 * 1024 * 1024  # safe ceiling for v7x (64 MiB phys) and below
    try:
        phys = pltpu.get_tpu_info().vmem_capacity_bytes
        limit = min(limit, (phys * 3) // 4)
    except Exception:
        pass
    return int(limit)


_VMEM_LIMIT = _vmem_limit_bytes()


def _compiler_params(grid_ndim):
    sem = ("parallel",) * (grid_ndim - 1) + ("arbitrary",)
    return pltpu.CompilerParams(
        dimension_semantics=sem, vmem_limit_bytes=_VMEM_LIMIT
    )


def _divisor_tile(padded, cap):
    """Largest multiple of 128 that divides `padded` (a 128-multiple) and <= cap."""
    best = 128
    t = 256
    top = min(cap, padded)
    while t <= top:
        if padded % t == 0:
            best = t
        t += 128
    return best


def _parallel_tile(padded, cap):
    """Like _divisor_tile, but keeps the grid extent >= 2 when possible so the
    'parallel' axis can be sharded across both TensorCores on v7x."""
    t = _divisor_tile(padded, cap)
    if padded // t < 2 and t > 128:
        t = _divisor_tile(padded, t // 2)
    return t


def _pad2(x, rows, cols, dtype=jnp.bfloat16):
    r, c = x.shape
    x = x.astype(dtype)
    if r == rows and c == cols:
        return x
    return jnp.pad(x, ((0, rows - r), (0, cols - c)))


# ----------------------------------------------------------------------------
# Tiled matmul: bf16 MXU inputs, f32 VMEM scratch accumulation, bf16 output
# with fused ReLU written only in the last-k epilogue.
# ----------------------------------------------------------------------------
def _matmul_kernel(a_ref, b_ref, o_ref, acc_ref, *, apply_relu):
    k = pl.program_id(2)
    part = jnp.dot(a_ref[...], b_ref[...], preferred_element_type=jnp.float32)

    @pl.when(k == 0)
    def _():
        acc_ref[...] = part

    @pl.when(k > 0)
    def _():
        acc_ref[...] += part

    @pl.when(k == pl.num_programs(2) - 1)
    def _():
        out = acc_ref[...]
        if apply_relu:
            out = jnp.maximum(out, 0.0)
        o_ref[...] = out.astype(o_ref.dtype)


def pallas_matmul(a, b, *, relu=False, out_dtype=jnp.bfloat16):
    """y = a @ b on pre-padded (128-multiple) operands."""
    M, K = a.shape
    K2, N = b.shape
    assert K == K2 and M % 128 == 0 and K % 128 == 0 and N % 128 == 0
    bm = _parallel_tile(M, 1024)
    bn = _divisor_tile(N, 512)
    bk = _divisor_tile(K, 1024)
    return pl.pallas_call(
        functools.partial(_matmul_kernel, apply_relu=relu),
        out_shape=jax.ShapeDtypeStruct((M, N), out_dtype),
        grid_spec=pltpu.PrefetchScalarGridSpec(
            num_scalar_prefetch=0,
            grid=(M // bm, N // bn, K // bk),
            in_specs=[
                pl.BlockSpec((bm, bk), lambda i, j, k: (i, k)),
                pl.BlockSpec((bk, bn), lambda i, j, k: (k, j)),
            ],
            out_specs=pl.BlockSpec((bm, bn), lambda i, j, k: (i, j)),
            scratch_shapes=[pltpu.VMEM((bm, bn), jnp.float32)],
        ),
        compiler_params=_compiler_params(3),
    )(a, b)


# ----------------------------------------------------------------------------
# Fused propagation + final fc:
#     res = (pre_PPR @ h) @ W_top + h @ W_bot
# prop is accumulated in an f32 VMEM scratch (never written to HBM); the two
# small epilogue matmuls run on the last k step with W_top/W_bot resident.
# ----------------------------------------------------------------------------
def _prop_res_kernel(ppr_ref, h_red_ref, h_row_ref, wtop_ref, wbot_ref,
                     res_ref, prop_acc):
    k = pl.program_id(1)
    part = jnp.dot(ppr_ref[...], h_red_ref[...],
                   preferred_element_type=jnp.float32)

    @pl.when(k == 0)
    def _():
        prop_acc[...] = part

    @pl.when(k > 0)
    def _():
        prop_acc[...] += part

    @pl.when(k == pl.num_programs(1) - 1)
    def _():
        res = jnp.dot(prop_acc[...].astype(jnp.bfloat16), wtop_ref[...],
                      preferred_element_type=jnp.float32)
        res = res + jnp.dot(h_row_ref[...], wbot_ref[...],
                            preferred_element_type=jnp.float32)
        res_ref[...] = res.astype(res_ref.dtype)


def pallas_prop_res(pre_ppr, h, w_top, w_bot, *, out_dtype=jnp.bfloat16):
    Np, Np2 = pre_ppr.shape
    Np3, Hp = h.shape
    Hp2, Cp = w_top.shape
    assert Np == Np2 == Np3 and Hp == Hp2 and w_bot.shape == (Hp, Cp)
    # Big row/k tiles for the HBM-bound pre_PPR stream; keep >= 2 row steps so
    # v7x's two TensorCores can split the parallel axis.
    bm = _parallel_tile(Np, 2048)
    bk = _divisor_tile(Np, 1024)
    return pl.pallas_call(
        _prop_res_kernel,
        out_shape=jax.ShapeDtypeStruct((Np, Cp), out_dtype),
        grid_spec=pltpu.PrefetchScalarGridSpec(
            num_scalar_prefetch=0,
            grid=(Np // bm, Np // bk),
            in_specs=[
                pl.BlockSpec((bm, bk), lambda i, k: (i, k)),   # pre_PPR tile
                pl.BlockSpec((bk, Hp), lambda i, k: (k, 0)),   # h (reduction side)
                pl.BlockSpec((bm, Hp), lambda i, k: (i, 0)),   # h (row block, epilogue)
                pl.BlockSpec((Hp, Cp), lambda i, k: (0, 0)),   # W_top (resident)
                pl.BlockSpec((Hp, Cp), lambda i, k: (0, 0)),   # W_bot (resident)
            ],
            out_specs=pl.BlockSpec((bm, Cp), lambda i, k: (i, 0)),
            scratch_shapes=[pltpu.VMEM((bm, Hp), jnp.float32)],
        ),
        compiler_params=_compiler_params(2),
    )(pre_ppr, h, h, w_top, w_bot)


# ----------------------------------------------------------------------------
# Final matmul with masked log_softmax fused into the last-k epilogue.
# The whole (padded) class axis lives in one lane tile.
# ----------------------------------------------------------------------------
def _matmul_logsoftmax_kernel(a_ref, b_ref, o_ref, *, n_valid):
    k = pl.program_id(2)
    part = jnp.dot(a_ref[...], b_ref[...], preferred_element_type=jnp.float32)

    @pl.when(k == 0)
    def _():
        o_ref[...] = part

    @pl.when(k > 0)
    def _():
        o_ref[...] += part

    @pl.when(k == pl.num_programs(2) - 1)
    def _():
        x = o_ref[...]
        col = jax.lax.broadcasted_iota(jnp.int32, x.shape, 1)
        valid = col < n_valid
        x = jnp.where(valid, x, -jnp.inf)
        m = jnp.max(x, axis=-1, keepdims=True)
        e = jnp.where(valid, jnp.exp(x - m), 0.0)
        s = jnp.sum(e, axis=-1, keepdims=True)
        o_ref[...] = jnp.where(valid, x - m - jnp.log(s), 0.0)


def pallas_matmul_logsoftmax(a, b, *, n_valid):
    M, K = a.shape
    K2, Cp = b.shape
    assert K == K2 and M % 8 == 0 and K % 128 == 0 and Cp % 128 == 0
    assert Cp <= 512, "fused log_softmax needs the class axis in one lane tile"
    bk = _divisor_tile(K, 1024)
    return pl.pallas_call(
        functools.partial(_matmul_logsoftmax_kernel, n_valid=n_valid),
        out_shape=jax.ShapeDtypeStruct((M, Cp), jnp.float32),
        grid_spec=pltpu.PrefetchScalarGridSpec(
            num_scalar_prefetch=0,
            grid=(1, 1, K // bk),
            in_specs=[
                pl.BlockSpec((M, bk), lambda i, j, k: (0, k)),
                pl.BlockSpec((bk, Cp), lambda i, j, k: (k, 0)),
            ],
            out_specs=pl.BlockSpec((M, Cp), lambda i, j, k: (0, 0)),
        ),
        compiler_params=_compiler_params(3),
    )(a, b)


# ----------------------------------------------------------------------------
# PPRGCN model: buffers/params built deterministically in-script.
# ----------------------------------------------------------------------------
def calc_A_hat(adj):
    """A_hat = D^{-1/2} (A + I) D^{-1/2}."""
    n = adj.shape[0]
    a = adj + jnp.eye(n, dtype=jnp.float32)
    d = jnp.sum(a, axis=1)
    d_inv_sqrt = 1.0 / jnp.sqrt(d)
    return a * d_inv_sqrt[:, None] * d_inv_sqrt[None, :]


def calc_pre_PPR_mat(a_hat, alpha, niter):
    """Truncated power iteration for the personalized-PageRank diffusion matrix."""
    n = a_hat.shape[0]
    eye = jnp.eye(n, dtype=jnp.float32)
    m = alpha * eye
    for _ in range(niter):
        m = (1.0 - alpha) * (a_hat @ m) + alpha * eye
    return m


def init_pprgcn_params(key, nfeatures, hiddenunits, nclasses):
    """Deterministic nn.Linear-style (kaiming-uniform) init, bias=False."""
    dims = []
    prev = nfeatures
    for h in hiddenunits:
        dims.append((prev, h))
        prev = h
    dims.append((hiddenunits[-1] * 2, nclasses))  # fc on cat(prop, h)
    keys = jax.random.split(key, len(dims))
    weights = []
    for k, (fan_in, fan_out) in zip(keys, dims):
        bound = 1.0 / jnp.sqrt(float(fan_in))
        weights.append(
            jax.random.uniform(k, (fan_in, fan_out), jnp.float32,
                               minval=-bound, maxval=bound))
    return weights


def build_pprgcn(attr_matrix, weights, pre_ppr_mat, hiddenunits, nclasses):
    """One-time build: pad every streamed operand to 128-multiples and cast to
    bf16, so the forward path never re-pads / re-casts the N x N PPR matrix or
    the intermediates."""
    n_nodes, nfeat = attr_matrix.shape
    np_ = _round_up(n_nodes, 128)
    fp = _round_up(nfeat, 128)
    hps = [_round_up(h, 128) for h in hiddenunits]
    cp = _round_up(nclasses, 128)

    attr_p = _pad2(attr_matrix, np_, fp)
    ws_p = []
    prev_p = fp
    for w, hp in zip(weights[:-1], hps):
        ws_p.append(_pad2(w, prev_p, hp))
        prev_p = hp
    hidden = hiddenunits[-1]
    w_last = weights[-1]
    w_top_p = _pad2(w_last[:hidden], hps[-1], cp)    # multiplies prop
    w_bot_p = _pad2(w_last[hidden:], hps[-1], cp)    # multiplies h
    pre_ppr_p = _pad2(pre_ppr_mat, np_, np_)
    return dict(attr=attr_p, fcs=ws_p, w_top=w_top_p, w_bot=w_bot_p,
                ppr=pre_ppr_p, n_nodes=n_nodes, nclasses=nclasses)


def pprgcn_forward(model, idx):
    """Matches PPRGCN.forward with drop_prob == 0 (dropout = identity)."""
    h = model["attr"]
    for w in model["fcs"]:
        h = pallas_matmul(h, w, relu=True)           # bf16 out, fused ReLU
    # res = (pre_PPR @ h) @ W_top + h @ W_bot : concat + fc fused, prop in VMEM.
    res = pallas_prop_res(model["ppr"], h, model["w_top"], model["w_bot"])
    # (pre_PPR @ res)[idx] == pre_PPR[idx] @ res : gather the few needed rows
    # first (tiny), log_softmax fused into the matmul epilogue.
    # TODO(synk): gather could move in-kernel via scalar-prefetched idx.
    rows = jnp.take(model["ppr"], idx, axis=0)
    mp = max(16, _round_up(idx.shape[0], 16))
    rows = _pad2(rows, mp, rows.shape[1])
    out = pallas_matmul_logsoftmax(rows, res, n_valid=model["nclasses"])
    return out[: idx.shape[0], : model["nclasses"]]


def pprgcn_reference(attr_matrix, idx, weights, pre_ppr_mat):
    """Pure-JAX f32 reference following the original op ordering."""
    h = jnp.maximum(attr_matrix @ weights[0], 0.0)
    for w in weights[1:-1]:
        h = jnp.maximum(h @ w, 0.0)
    prop = pre_ppr_mat @ h
    cat = jnp.concatenate([prop, h], axis=1)
    res = cat @ weights[-1]
    res = pre_ppr_mat @ res
    final = jnp.take(res, idx, axis=0)
    return jax.nn.log_softmax(final, axis=-1)


if __name__ == "__main__":
    # Small shapes; deliberately NOT multiples of 128 to exercise padding.
    N_NODES = 200
    NFEATURES = 96
    HIDDENUNITS = [64]
    NCLASSES = 7
    ALPHA = 0.1
    NITER = 10
    N_IDX = 5

    root = jax.random.PRNGKey(0)
    k_adj, k_feat, k_w, k_idx = jax.random.split(root, 4)

    # Random symmetric binary adjacency (no self loops; calc_A_hat adds I).
    upper = (jax.random.uniform(k_adj, (N_NODES, N_NODES)) < 0.05).astype(
        jnp.float32)
    adj = jnp.triu(upper, k=1)
    adj = adj + adj.T

    a_hat = calc_A_hat(adj)
    pre_ppr_mat = calc_pre_PPR_mat(a_hat, ALPHA, NITER)

    attr_matrix = jax.random.normal(k_feat, (N_NODES, NFEATURES), jnp.float32)
    weights = init_pprgcn_params(k_w, NFEATURES, HIDDENUNITS, NCLASSES)
    idx = jax.random.permutation(k_idx, N_NODES)[:N_IDX].astype(jnp.int32)

    # One-time build: pad + cast to bf16 (removed from the forward path).
    model = build_pprgcn(attr_matrix, weights, pre_ppr_mat, HIDDENUNITS,
                         NCLASSES)

    out = pprgcn_forward(model, idx)
    out = jax.block_until_ready(out)

    assert out.shape == (N_IDX, NCLASSES), out.shape
    assert bool(jnp.all(jnp.isfinite(out)))
    # Rows of log_softmax exp-sum to 1.
    assert bool(jnp.all(jnp.abs(jnp.sum(jnp.exp(out), axis=-1) - 1.0) < 1e-3))
    # Match the f32 reference (loose tolerance: bf16 MXU inputs).
    ref = pprgcn_reference(attr_matrix, idx, weights, pre_ppr_mat)
    max_err = float(jnp.max(jnp.abs(out - ref)))
    assert max_err < 0.2, max_err
    print("KERNEL_OK")
</pallas_src>

<mosaic_0001>
module attributes {stable_mosaic.version = 11 : i64} {
  func.func @_matmul_kernel(%arg0: i32, %arg1: i32, %arg2: i32, %arg3: memref<128x128xbf16, #tpu.memory_space<vmem>>, %arg4: memref<128x128xbf16, #tpu.memory_space<vmem>>, %arg5: memref<128x128xbf16, #tpu.memory_space<vmem>>, %arg6: memref<128x128xf32, #tpu.memory_space<vmem>>) attributes {dimension_semantics = [#tpu.dimension_semantics<parallel>, #tpu.dimension_semantics<parallel>, #tpu.dimension_semantics<arbitrary>], iteration_bounds = array<i64: 2, 1, 1>, scalar_prefetch = 0 : i64, scratch_operands = 1 : i64, tpu.core_type = #tpu.core_type<tc>, window_params = [{transform_indices = @transform_0, window_bounds = array<i64: 128, 128>}, {transform_indices = @transform_1, window_bounds = array<i64: 128, 128>}, {transform_indices = @transform_2, window_bounds = array<i64: 128, 128>}]} {
    %c0 = arith.constant 0 : index
    %c0_0 = arith.constant 0 : index
    %0 = vector.load %arg3[%c0, %c0_0] : memref<128x128xbf16, #tpu.memory_space<vmem>>, vector<128x128xbf16>
    %c0_1 = arith.constant 0 : index
    %c0_2 = arith.constant 0 : index
    %1 = vector.load %arg4[%c0_1, %c0_2] : memref<128x128xbf16, #tpu.memory_space<vmem>>, vector<128x128xbf16>
    %cst = arith.constant dense<0.000000e+00> : vector<128x128xf32>
    %2 = tpu.matmul %0, %1, %cst {dimension_numbers = #tpu.dot_dimension_numbers<[1], [0], [0], [1], [0, 0, 1, 1], [], []>} : vector<128x128xbf16>, vector<128x128xbf16>, vector<128x128xf32> -> vector<128x128xf32>
    %c0_i32 = arith.constant 0 : i32
    %3 = arith.cmpi eq, %arg2, %c0_i32 : i32
    %4 = arith.extui %3 : i1 to i32
    %c0_i32_3 = arith.constant 0 : i32
    %5 = arith.cmpi ne, %4, %c0_i32_3 : i32
    scf.if %5 {
      %c0_8 = arith.constant 0 : index
      %c0_9 = arith.constant 0 : index
      %12 = vector.load %arg6[%c0_8, %c0_9] : memref<128x128xf32, #tpu.memory_space<vmem>>, vector<128x128xf32>
      tpu.vector_store %arg6[%c0_8, %c0_9], %2 {strides = array<i32>} : memref<128x128xf32, #tpu.memory_space<vmem>>, vector<128x128xf32>,
    } else {
    }
    %c0_i32_4 = arith.constant 0 : i32
    %6 = arith.cmpi sgt, %arg2, %c0_i32_4 : i32
    %7 = arith.extui %6 : i1 to i32
    %c0_i32_5 = arith.constant 0 : i32
    %8 = arith.cmpi ne, %7, %c0_i32_5 : i32
    scf.if %8 {
      %c0_8 = arith.constant 0 : index
      %c0_9 = arith.constant 0 : index
      %12 = vector.load %arg6[%c0_8, %c0_9] : memref<128x128xf32, #tpu.memory_space<vmem>>, vector<128x128xf32>
      %13 = arith.addf %12, %2 : vector<128x128xf32>
      %c0_10 = arith.constant 0 : index
      %c0_11 = arith.constant 0 : index
      %14 = vector.load %arg6[%c0_10, %c0_11] : memref<128x128xf32, #tpu.memory_space<vmem>>, vector<128x128xf32>
      tpu.vector_store %arg6[%c0_10, %c0_11], %13 {strides = array<i32>} : memref<128x128xf32, #tpu.memory_space<vmem>>, vector<128x128xf32>,
    } else {
    }
    %c0_i32_6 = arith.constant 0 : i32
    %9 = arith.cmpi eq, %arg2, %c0_i32_6 : i32
    %10 = arith.extui %9 : i1 to i32
    %c0_i32_7 = arith.constant 0 : i32
    %11 = arith.cmpi ne, %10, %c0_i32_7 : i32
    scf.if %11 {
      %c0_8 = arith.constant 0 : index
      %c0_9 = arith.constant 0 : index
      %12 = vector.load %arg6[%c0_8, %c0_9] : memref<128x128xf32, #tpu.memory_space<vmem>>, vector<128x128xf32>
      %cst_10 = arith.constant 0.000000e+00 : f32
      %13 = vector.broadcast %cst_10 : f32 to vector<128x128xf32>
      %14 = arith.maximumf %12, %13 : vector<128x128xf32>
      %15 = arith.truncf %14 : vector<128x128xf32> to vector<128x128xbf16>
      %c0_11 = arith.constant 0 : index
      %c0_12 = arith.constant 0 : index
      %16 = vector.load %arg5[%c0_11, %c0_12] : memref<128x128xbf16, #tpu.memory_space<vmem>>, vector<128x128xbf16>
      tpu.vector_store %arg5[%c0_11, %c0_12], %15 {strides = array<i32>} : memref<128x128xbf16, #tpu.memory_space<vmem>>, vector<128x128xbf16>,
    } else {
    }
    return
  }
  func.func @transform_0(%arg0: i32, %arg1: i32, %arg2: i32) -> (i32, i32) {
    %c0_i32 = arith.constant 0 : i32
    return %arg0, %arg2 : i32, i32
  }
  func.func @transform_1(%arg0: i32, %arg1: i32, %arg2: i32) -> (i32, i32) {
    %c0_i32 = arith.constant 0 : i32
    return %arg2, %arg1 : i32, i32
  }
  func.func @transform_2(%arg0: i32, %arg1: i32, %arg2: i32) -> (i32, i32) {
    %c0_i32 = arith.constant 0 : i32
    return %arg0, %arg1 : i32, i32
  }
}

</mosaic_0001>

<llo_original>
// kernel: tpu_custom_call.1
$region0: #{tpu_custom_call.1}
  #allocation0 [shape = 'u32[]', space=smem, size = 0x4, offset = 0x4, fixed_abs, tag = 'smem constant byte address 0x4 - core index']
  #allocation1 [shape = 'u32[72,128]{1,0:T(1,128)}', space=vmem, size = 0x9000, scoped, tag = 'internal scratch']
  #allocation2 [shape = 'f32[128,128]{1,0:T(8,128)}', space=vmem, size = 0x10000, scoped, tag = 'scratch operand']
  %s0 = inlined_call_operand.hbm [shape: bf16[256,128], index: 0, kind: input, shape index: {}]
  %s1 = inlined_call_operand.hbm [shape: bf16[128,128], index: 1, kind: input, shape index: {}]
  %s2 = inlined_call_operand.hbm [shape: bf16[256,128], index: 2, kind: output, shape index: {}]
  %s3 = sld [smem:[#allocation0]]
  $region61: #{tpu_custom_call.1} parent=0
    _
  %s5 = ssub.s32 1, %s3
  %s6 = scalar_select 0, %s5, %s3
  $region1: #{tpu_custom_call.1} parent=0
    #allocation3 [shape = 'u8[65536]{0}', space=vmem, size = 0x10000, scoped, tag = 'input window, operand 0']
    #allocation4 [shape = 's32[2]{0}', space=sflag, size = 0x8, scoped, tag = 'scoped memory for tpu_custom_call.1']
    #allocation5 [shape = 's32[2]{0}', space=sflag, size = 0x8, scoped, tag = 'scoped memory for tpu_custom_call.1']
    #allocation6 [shape = 'u8[32768]{0}', space=vmem, size = 0x8000, scoped, tag = 'input window, operand 1, single buffered']
    #allocation7 [shape = 's32[1]{0}', space=sflag, size = 0x4, scoped, tag = 'scoped memory for tpu_custom_call.1']
    #allocation8 [shape = 'u8[65536]{0}', space=vmem, size = 0x10000, scoped, tag = 'output window, operand 0']
    %7 = vsyncpa [#allocation4], 0
    %s8 = scalar_lea.sflag [#allocation4], 1
    %9 = vsyncpa %s8, 0
    %10 = vsyncpa [#allocation7], 0
    %11 = vsyncpa [#allocation5], 0
    %s12 = scalar_lea.sflag [#allocation5], 1
    %13 = vsyncpa %s12, 0
    loop: start=0, step=1, limit=4
    $region2: #{tpu_custom_call.1} parent=1 // loop_pre_header
      _
    $region3: #{tpu_custom_call.1} parent=1 // loop_header
      %s15 = sphi 0, %s19
      %p16 = scmp.ge.s32.totalorder %s15, 4
      %s22 = sphi 0, %s41
      %s23 = sphi 0, %s37
      %s24 = sphi 0, %s33
      %s25 = sphi 0, %s22
      %s26 = sphi 0, %s23
      %s27 = sphi 0, %s24
      %s28 = sphi 0, %s25
      %s29 = sphi 0, %s26
      %s30 = sphi 0, %s27
      %s46 = sphi 0, %s48
      %s49 = sphi 0, %s46
      %s50 = sphi 0, %s49
      %s66 = sphi 0, %s50
      %s74 = sphi 0, %s76
      %s77 = sphi 0, %s74
      %s78 = sphi 0, %s77
      %s94 = sphi 0, %s78
      %s102 = sphi 0, %s104
      %s105 = sphi 0, %s102
      %s106 = sphi 0, %s105
      %s122 = sphi 0, %s106
    $region4: #{tpu_custom_call.1} parent=1 // loop_header_branch
      %18 = sbr.rel (%p16) target = $region8
    $region5: #{tpu_custom_call.1} parent=1 // loop_body
      %s20 = ssub.s32 %s15, 1
      %s21 = ssub.s32 %s15, 2
      %s31 = sadd.s32 1, %s24
      %p32 = scmp.ge.s32.totalorder %s31, 1
      %s33 = scalar_select %p32, 0, %s31
      %s34 = sadd.s32 1, %s23
      %s35 = scalar_select %p32, %s34, %s23
      %p36 = scmp.ge.s32.totalorder %s35, 1
      %s37 = scalar_select %p36, 0, %s35
      %s38 = sadd.s32 1, %s22
      %s39 = scalar_select %p36, %s38, %s22
      %p40 = scmp.ge.s32.totalorder %s39, 2
      %s41 = scalar_select %p40, 0, %s39
      %s42 = ssub.s32 %s22, %s41
      %s43 = ssub.s32 %s24, %s33
      %s44 = sor.u32 %s42, %s43
      %p45 = scmp.eq.s32.totalorder %s44, 0
      %s47 = sadd.s32 %s46, 1
      %s48 = scalar_select %p45, %s46, %s47
      %p51 = pneg %p45
      %p52 = scmp.eq.s32.totalorder %s15, 1
      %p53 = por %p51, %p52
      %p54 = scmp.ne.s32.totalorder %s46, %s49
      %p55 = scmp.eq.s32.totalorder %s15, 0
      %p56 = por %p54, %p55
      %p57 = scmp.ne.s32.totalorder %s46, %s49
      %p58 = scmp.eq.s32.totalorder %s20, 1
      %p59 = por %p57, %p58
      %p60 = scmp.ne.s32.totalorder %s49, %s50
      %p61 = scmp.eq.s32.totalorder %s20, 0
      %p62 = por %p60, %p61
      %p63 = scmp.ne.s32.totalorder %s49, %s50
      %p64 = scmp.eq.s32.totalorder %s21, 1
      %p65 = por %p63, %p64
      %p67 = scmp.ne.s32.totalorder %s50, %s66
      %p68 = scmp.eq.s32.totalorder %s21, 0
      %p69 = por %p67, %p68
      %s70 = ssub.s32 %s24, %s33
      %s71 = ssub.s32 %s23, %s37
      %s72 = sor.u32 %s70, %s71
      %p73 = scmp.eq.s32.totalorder %s72, 0
      %s75 = sadd.s32 %s74, 1
      %s76 = scalar_select %p73, %s74, %s75
      %p79 = pneg %p73
      %p80 = scmp.eq.s32.totalorder %s15, 1
      %p81 = por %p79, %p80
      %p82 = scmp.ne.s32.totalorder %s74, %s77
      %p83 = scmp.eq.s32.totalorder %s15, 0
      %p84 = por %p82, %p83
      %p85 = scmp.ne.s32.totalorder %s74, %s77
      %p86 = scmp.eq.s32.totalorder %s20, 1
      %p87 = por %p85, %p86
      %p88 = scmp.ne.s32.totalorder %s77, %s78
      %p89 = scmp.eq.s32.totalorder %s20, 0
      %p90 = por %p88, %p89
      %p91 = scmp.ne.s32.totalorder %s77, %s78
      %p92 = scmp.eq.s32.totalorder %s21, 1
      %p93 = por %p91, %p92
      %p95 = scmp.ne.s32.totalorder %s78, %s94
      %p96 = scmp.eq.s32.totalorder %s21, 0
      %p97 = por %p95, %p96
      %s98 = ssub.s32 %s22, %s41
      %s99 = ssub.s32 %s23, %s37
      %s100 = sor.u32 %s98, %s99
      %p101 = scmp.eq.s32.totalorder %s100, 0
      %s103 = sadd.s32 %s102, 1
      %s104 = scalar_select %p101, %s102, %s103
      %p107 = pneg %p101
      %p108 = scmp.eq.s32.totalorder %s15, 1
      %p109 = por %p107, %p108
      %p110 = scmp.ne.s32.totalorder %s102, %s105
      %p111 = scmp.eq.s32.totalorder %s15, 0
      %p112 = por %p110, %p111
      %p113 = scmp.ne.s32.totalorder %s102, %s105
      %p114 = scmp.eq.s32.totalorder %s20, 1
      %p115 = por %p113, %p114
      %p116 = scmp.ne.s32.totalorder %s105, %s106
      %p117 = scmp.eq.s32.totalorder %s20, 0
      %p118 = por %p116, %p117
      %p119 = scmp.ne.s32.totalorder %s105, %s106
      %p120 = scmp.eq.s32.totalorder %s21, 1
      %p121 = por %p119, %p120
      %p123 = scmp.ne.s32.totalorder %s106, %s122
      %p124 = scmp.eq.s32.totalorder %s21, 0
      %p125 = por %p123, %p124
      %p126 = scmp.le.s32.totalorder 1, %s15
      %p127 = scmp.lt.s32.totalorder %s15, 3
      %p128 = pnand %p126, %p127
      %p129 = pneg %p128
      // Predicated region
      $region9: #{tpu_custom_call.1} parent=5 // pred_check
        _
      $region10: #{tpu_custom_call.1} parent=5 // pred_check_branch
        %131 = sbr.rel (%p128) target = $region12
      $region11: #{tpu_custom_call.1} parent=5 // pred_region
        %s132 = ssub.s32 %s15, 1
        // Predicated region
        $region13: #{tpu_custom_call.1} parent=11 // pred_check
          %p133 = pneg %p90
        $region14: #{tpu_custom_call.1} parent=11 // pred_check_branch
          %135 = sbr.rel (%p133) target = $region16
        $region15: #{tpu_custom_call.1} parent=11 // pred_region
          %s136 = smul.u32 16, %s27
          %138 = vsyncadd [#allocation7], 0
          %s139 = sadd.s32 %s26, %s136
          %s140 = smul.addr %s139, 4
          %s141 = scalar_lea.hbm %s1, %s140
          %s142 = sshll.u32 %s141, 4
          %s143 = int_to_ptr.hbm [resolvable:$true] %s142
          %s144 = sshll.u32 [#allocation6], 4
          %s145 = int_to_ptr.vmem [resolvable:$true] %s144
          %150 = dma.hbm_to_vmem [thread:$0]  %s143, 1024, %s145, [#allocation7], 64, 64, 4
        $region16: #{tpu_custom_call.1} parent=11 // pred_fallthru
          _
      $region12: #{tpu_custom_call.1} parent=5 // pred_fallthru
        _
      %p151 = scmp.lt.s32.totalorder %s15, 2
      // Predicated region
      $region17: #{tpu_custom_call.1} parent=5 // pred_check
        %p152 = pneg %p151
      $region18: #{tpu_custom_call.1} parent=5 // pred_check_branch
        %154 = sbr.rel (%p152) target = $region20
      $region19: #{tpu_custom_call.1} parent=5 // pred_region
        // Predicated region
        $region21: #{tpu_custom_call.1} parent=19 // pred_check
          %p155 = pneg %p56
        $region22: #{tpu_custom_call.1} parent=19 // pred_check_branch
          %157 = sbr.rel (%p155) target = $region24
        $region23: #{tpu_custom_call.1} parent=19 // pred_region
          %s158 = sand.u32 %s46, 1
          %s159 = scalar_lea.sflag [#allocation4], %s158
          %s160 = sand.u32 %s46, 1
          %s161 = smul.addr %s160, 64
          %s162 = scalar_lea.vmem [#allocation3], %s161
          %s163 = smul.u32 16, %s22
          %165 = vsyncadd %s159, 0
          %s166 = sadd.s32 %s24, %s163
          %s167 = smul.addr %s166, 4
          %s168 = scalar_lea.hbm %s0, %s167
          %s169 = sshll.u32 %s168, 4
          %s170 = int_to_ptr.hbm [resolvable:$true] %s169
          %s171 = sshll.u32 %s162, 4
          %s172 = int_to_ptr.vmem [resolvable:$true] %s171
          %177 = dma.hbm_to_vmem [thread:$0]  %s170, 1024, %s172, %s159, 64, 64, 4
        $region24: #{tpu_custom_call.1} parent=19 // pred_fallthru
          _
      $region20: #{tpu_custom_call.1} parent=5 // pred_fallthru
        _
      %p178 = scmp.le.s32.totalorder 1, %s15
      %p179 = scmp.lt.s32.totalorder %s15, 3
      %p180 = pnand %p178, %p179
      %p181 = pneg %p180
      // Predicated region
      $region25: #{tpu_custom_call.1} parent=5 // pred_check
        _
      $region26: #{tpu_custom_call.1} parent=5 // pred_check_branch
        %183 = sbr.rel (%p180) target = $region28
      $region27: #{tpu_custom_call.1} parent=5 // pred_region
        %s184 = ssub.s32 %s15, 1
        %s185 = sand.u32 %s49, 1
        %s186 = scalar_lea.sflag [#allocation4], %s185
        %s187 = sand.u32 %s49, 1
        %s188 = smul.addr %s187, 64
        %s189 = scalar_lea.vmem [#allocation3], %s188
        // Predicated region
        $region29: #{tpu_custom_call.1} parent=27 // pred_check
          %p190 = pneg %p62
        $region30: #{tpu_custom_call.1} parent=27 // pred_check_branch
          %192 = sbr.rel (%p190) target = $region32
        $region31: #{tpu_custom_call.1} parent=27 // pred_region
          %194 = dma.done %s186, 1024
        $region32: #{tpu_custom_call.1} parent=27 // pred_fallthru
          _
        // Predicated region
        $region33: #{tpu_custom_call.1} parent=27 // pred_check
          %p195 = pneg %p90
        $region34: #{tpu_custom_call.1} parent=27 // pred_check_branch
          %197 = sbr.rel (%p195) target = $region36
        $region35: #{tpu_custom_call.1} parent=27 // pred_region
          %199 = dma.done [#allocation7], 1024
        $region36: #{tpu_custom_call.1} parent=27 // pred_fallthru
          _
        %s200 = sand.u32 %s49, 1
        %s201 = scalar_lea.sflag [#allocation4], %s200
        %s202 = sand.u32 %s49, 1
        %s203 = smul.addr %s202, 64
        %s204 = scalar_lea.vmem [#allocation3], %s203
        %p205 = pneg %p62
        %p206 = pneg %p59
        %p207 = pneg %p90
        %p208 = pneg %p87
        %p209 = pneg %p118
        %p210 = pneg %p115
        %s211 = sand.u32 %s105, 1
        %s212 = scalar_lea.sflag [#allocation5], %s211
        %s213 = sand.u32 %s105, 1
        %s214 = smul.addr %s213, 64
        %s215 = scalar_lea.vmem [#allocation8], %s214
        %s216 = smul.u32 16, %s25
        %s217 = smul.u32 16, %s27
        %s218 = smul.u32 16, %s25
        %v219 = vld [vmem:[%s189] sm:$0xf]
        %v220 = vld [vmem:[%s189 + $0x4] sm:$0xf]
        %v221 = vld [vmem:[%s189 + $0x8] sm:$0xf]
        %v222 = vld [vmem:[%s189 + $0xc] sm:$0xf]
        %v223 = vld [vmem:[%s189 + $0x10] sm:$0xf]
        %v224 = vld [vmem:[%s189 + $0x14] sm:$0xf]
        %v225 = vld [vmem:[%s189 + $0x18] sm:$0xf]
        %v226 = vld [vmem:[%s189 + $0x1c] sm:$0xf]
        %v227 = vld [vmem:[%s189 + $0x20] sm:$0xf]
        %v228 = vld [vmem:[%s189 + $0x24] sm:$0xf]
        %v229 = vld [vmem:[%s189 + $0x28] sm:$0xf]
        %v230 = vld [vmem:[%s189 + $0x2c] sm:$0xf]
        %v231 = vld [vmem:[%s189 + $0x30] sm:$0xf]
        %v232 = vld [vmem:[%s189 + $0x34] sm:$0xf]
        %v233 = vld [vmem:[%s189 + $0x38] sm:$0xf]
        %v234 = vld [vmem:[%s189 + $0x3c] sm:$0xf]
        %v235 = vld [vmem:[#allocation6] sm:$0xf]
        %v236 = vld [vmem:[#allocation6 + $0x4] sm:$0xf]
        %v237 = vld [vmem:[#allocation6 + $0x8] sm:$0xf]
        %v238 = vld [vmem:[#allocation6 + $0xc] sm:$0xf]
        %v239 = vld [vmem:[#allocation6 + $0x10] sm:$0xf]
        %v240 = vld [vmem:[#allocation6 + $0x14] sm:$0xf]
        %v241 = vld [vmem:[#allocation6 + $0x18] sm:$0xf]
        %v242 = vld [vmem:[#allocation6 + $0x1c] sm:$0xf]
        %v243 = vld [vmem:[#allocation6 + $0x20] sm:$0xf]
        %v244 = vld [vmem:[#allocation6 + $0x24] sm:$0xf]
        %v245 = vld [vmem:[#allocation6 + $0x28] sm:$0xf]
        %v246 = vld [vmem:[#allocation6 + $0x2c] sm:$0xf]
        %v247 = vld [vmem:[#allocation6 + $0x30] sm:$0xf]
        %v248 = vld [vmem:[#allocation6 + $0x34] sm:$0xf]
        %v249 = vld [vmem:[#allocation6 + $0x38] sm:$0xf]
        %v250 = vld [vmem:[#allocation6 + $0x3c] sm:$0xf]
        %v267 = vunpack.c.l.b16 %v219
        %v268 = vunpack.c.l.b16 %v220
        %v269 = vunpack.c.l.b16 %v221
        %v270 = vunpack.c.l.b16 %v222
        %v271 = vunpack.c.l.b16 %v223
        %v272 = vunpack.c.l.b16 %v224
        %v273 = vunpack.c.l.b16 %v225
        %v274 = vunpack.c.l.b16 %v226
        %v275 = vunpack.c.l.b16 %v227
        %v276 = vunpack.c.l.b16 %v228
        %v277 = vunpack.c.l.b16 %v229
        %v278 = vunpack.c.l.b16 %v230
        %v279 = vunpack.c.l.b16 %v231
        %v280 = vunpack.c.l.b16 %v232
        %v281 = vunpack.c.l.b16 %v233
        %v282 = vunpack.c.l.b16 %v234
        %v283 = vpack.c.b16 %v268, %v267
        %v284 = vpack.c.b16 %v270, %v269
        %v285 = vpack.c.b16 %v272, %v271
        %v286 = vpack.c.b16 %v274, %v273
        %v287 = vpack.c.b16 %v276, %v275
        %v288 = vpack.c.b16 %v278, %v277
        %v289 = vpack.c.b16 %v280, %v279
        %v290 = vpack.c.b16 %v282, %v281
        %v315 = vunpack.c.l.b16 %v235
        %v316 = vunpack.c.l.b16 %v236
        %v317 = vunpack.c.l.b16 %v237
        %v318 = vunpack.c.l.b16 %v238
        %v319 = vunpack.c.l.b16 %v239
        %v320 = vunpack.c.l.b16 %v240
        %v321 = vunpack.c.l.b16 %v241
        %v322 = vunpack.c.l.b16 %v242
        %v323 = vunpack.c.l.b16 %v243
        %v324 = vunpack.c.l.b16 %v244
        %v325 = vunpack.c.l.b16 %v245
        %v326 = vunpack.c.l.b16 %v246
        %v327 = vunpack.c.l.b16 %v247
        %v328 = vunpack.c.l.b16 %v248
        %v329 = vunpack.c.l.b16 %v249
        %v330 = vunpack.c.l.b16 %v250
        %v331 = vpack.c.b16 %v316, %v315
        %v332 = vpack.c.b16 %v318, %v317
        %v333 = vpack.c.b16 %v320, %v319
        %v334 = vpack.c.b16 %v322, %v321
        %v335 = vpack.c.b16 %v324, %v323
        %v336 = vpack.c.b16 %v326, %v325
        %v337 = vpack.c.b16 %v328, %v327
        %v338 = vpack.c.b16 %v330, %v329
        %347 = vmatpush.bf16.msra.mxu0 %v338
        %348 = vmatpush.bf16.msra.mxu0 %v337
        %349 = vmatpush.bf16.msra.mxu0 %v336
        %350 = vmatpush.bf16.msra.mxu0 %v335
        %351 = vmatpush.bf16.msra.mxu0 %v334
        %352 = vmatpush.bf16.msra.mxu0 %v333
        %353 = vmatpush.bf16.msra.mxu0 %v332
        %354 = vmatpush.bf16.msra.mxu0 %v331
        %355 = vmatmul.bf16.gmra.mxu0 %v283
        %v356 = vpop.f32.mrf.mxu0
        %v357 = vadd.f32 0.0, %v356
        %v358 = vpop.f32.mrf.mxu0
        %v359 = vadd.f32 0.0, %v358
        %360 = vmatmul.bf16.gmra.mxu0 %v284
        %v361 = vpop.f32.mrf.mxu0
        %v362 = vadd.f32 0.0, %v361
        %v363 = vpop.f32.mrf.mxu0
        %v364 = vadd.f32 0.0, %v363
        %365 = vmatmul.bf16.gmra.mxu0 %v285
        %v366 = vpop.f32.mrf.mxu0
        %v367 = vadd.f32 0.0, %v366
        %v368 = vpop.f32.mrf.mxu0
        %v369 = vadd.f32 0.0, %v368
        %370 = vmatmul.bf16.gmra.mxu0 %v286
        %v371 = vpop.f32.mrf.mxu0
        %v372 = vadd.f32 0.0, %v371
        %v373 = vpop.f32.mrf.mxu0
        %v374 = vadd.f32 0.0, %v373
        %375 = vmatmul.bf16.gmra.mxu0 %v287
        %v376 = vpop.f32.mrf.mxu0
        %v377 = vadd.f32 0.0, %v376
        %v378 = vpop.f32.mrf.mxu0
        %v379 = vadd.f32 0.0, %v378
        %380 = vmatmul.bf16.gmra.mxu0 %v288
        %v381 = vpop.f32.mrf.mxu0
        %v382 = vadd.f32 0.0, %v381
        %v383 = vpop.f32.mrf.mxu0
        %v384 = vadd.f32 0.0, %v383
        %385 = vmatmul.bf16.gmra.mxu0 %v289
        %v386 = vpop.f32.mrf.mxu0
        %v387 = vadd.f32 0.0, %v386
        %v388 = vpop.f32.mrf.mxu0
        %v389 = vadd.f32 0.0, %v388
        %390 = vmatmul.bf16.gmra.mxu0 %v290
        %v391 = vpop.f32.mrf.mxu0
        %v392 = vadd.f32 0.0, %v391
        %v393 = vpop.f32.mrf.mxu0
        %v394 = vadd.f32 0.0, %v393
        %395 = vdwg.mxu0
        %p396 = scmp.eq.s32.totalorder %s27, 0
        // Predicated region
        $region37: #{tpu_custom_call.1} parent=27 // pred_check
          %p397 = pneg %p396
        $region38: #{tpu_custom_call.1} parent=27 // pred_check_branch
          %399 = sbr.rel (%p397) target = $region40
        $region39: #{tpu_custom_call.1} parent=27 // pred_region
          %400 = vst [vmem:[#allocation2] sm:$0xff] %v357
          %401 = vst [vmem:[#allocation2 + $0x8] sm:$0xff] %v359
          %402 = vst [vmem:[#allocation2 + $0x10] sm:$0xff] %v362
          %403 = vst [vmem:[#allocation2 + $0x18] sm:$0xff] %v364
          %404 = vst [vmem:[#allocation2 + $0x20] sm:$0xff] %v367
          %405 = vst [vmem:[#allocation2 + $0x28] sm:$0xff] %v369
          %406 = vst [vmem:[#allocation2 + $0x30] sm:$0xff] %v372
          %407 = vst [vmem:[#allocation2 + $0x38] sm:$0xff] %v374
          %408 = vst [vmem:[#allocation2 + $0x40] sm:$0xff] %v377
          %409 = vst [vmem:[#allocation2 + $0x48] sm:$0xff] %v379
          %410 = vst [vmem:[#allocation2 + $0x50] sm:$0xff] %v382
          %411 = vst [vmem:[#allocation2 + $0x58] sm:$0xff] %v384
          %412 = vst [vmem:[#allocation2 + $0x60] sm:$0xff] %v387
          %413 = vst [vmem:[#allocation2 + $0x68] sm:$0xff] %v389
          %414 = vst [vmem:[#allocation2 + $0x70] sm:$0xff] %v392
          %415 = vst [vmem:[#allocation2 + $0x78] sm:$0xff] %v394
        $region40: #{tpu_custom_call.1} parent=27 // pred_fallthru
          _
        %p416 = scmp.gt.s32.totalorder %s27, 0
        // Predicated region
        $region41: #{tpu_custom_call.1} parent=27 // pred_check
          %p417 = pneg %p416
        $region42: #{tpu_custom_call.1} parent=27 // pred_check_branch
          %419 = sbr.rel (%p417) target = $region44
        $region43: #{tpu_custom_call.1} parent=27 // pred_region
          %v420 = vld [vmem:[#allocation2] sm:$0xff]
          %v421 = vld [vmem:[#allocation2 + $0x8] sm:$0xff]
          %v422 = vld [vmem:[#allocation2 + $0x10] sm:$0xff]
          %v423 = vld [vmem:[#allocation2 + $0x18] sm:$0xff]
          %v424 = vld [vmem:[#allocation2 + $0x20] sm:$0xff]
          %v425 = vld [vmem:[#allocation2 + $0x28] sm:$0xff]
          %v426 = vld [vmem:[#allocation2 + $0x30] sm:$0xff]
          %v427 = vld [vmem:[#allocation2 + $0x38] sm:$0xff]
          %v428 = vld [vmem:[#allocation2 + $0x40] sm:$0xff]
          %v429 = vld [vmem:[#allocation2 + $0x48] sm:$0xff]
          %v430 = vld [vmem:[#allocation2 + $0x50] sm:$0xff]
          %v431 = vld [vmem:[#allocation2 + $0x58] sm:$0xff]
          %v432 = vld [vmem:[#allocation2 + $0x60] sm:$0xff]
          %v433 = vld [vmem:[#allocation2 + $0x68] sm:$0xff]
          %v434 = vld [vmem:[#allocation2 + $0x70] sm:$0xff]
          %v435 = vld [vmem:[#allocation2 + $0x78] sm:$0xff]
          %v436 = vadd.f32 %v420, %v357
          %v437 = vadd.f32 %v421, %v359
          %v438 = vadd.f32 %v422, %v362
          %v439 = vadd.f32 %v423, %v364
          %v440 = vadd.f32 %v424, %v367
          %v441 = vadd.f32 %v425, %v369
          %v442 = vadd.f32 %v426, %v372
          %v443 = vadd.f32 %v427, %v374
          %v444 = vadd.f32 %v428, %v377
          %v445 = vadd.f32 %v429, %v379
          %v446 = vadd.f32 %v430, %v382
          %v447 = vadd.f32 %v431, %v384
          %v448 = vadd.f32 %v432, %v387
          %v449 = vadd.f32 %v433, %v389
          %v450 = vadd.f32 %v434, %v392
          %v451 = vadd.f32 %v435, %v394
          %452 = vst [vmem:[#allocation2] sm:$0xff] %v436
          %453 = vst [vmem:[#allocation2 + $0x8] sm:$0xff] %v437
          %454 = vst [vmem:[#allocation2 + $0x10] sm:$0xff] %v438
          %455 = vst [vmem:[#allocation2 + $0x18] sm:$0xff] %v439
          %456 = vst [vmem:[#allocation2 + $0x20] sm:$0xff] %v440
          %457 = vst [vmem:[#allocation2 + $0x28] sm:$0xff] %v441
          %458 = vst [vmem:[#allocation2 + $0x30] sm:$0xff] %v442
          %459 = vst [vmem:[#allocation2 + $0x38] sm:$0xff] %v443
          %460 = vst [vmem:[#allocation2 + $0x40] sm:$0xff] %v444
          %461 = vst [vmem:[#allocation2 + $0x48] sm:$0xff] %v445
          %462 = vst [vmem:[#allocation2 + $0x50] sm:$0xff] %v446
          %463 = vst [vmem:[#allocation2 + $0x58] sm:$0xff] %v447
          %464 = vst [vmem:[#allocation2 + $0x60] sm:$0xff] %v448
          %465 = vst [vmem:[#allocation2 + $0x68] sm:$0xff] %v449
          %466 = vst [vmem:[#allocation2 + $0x70] sm:$0xff] %v450
          %467 = vst [vmem:[#allocation2 + $0x78] sm:$0xff] %v451
        $region44: #{tpu_custom_call.1} parent=27 // pred_fallthru
          _
        // Predicated region
        $region45: #{tpu_custom_call.1} parent=27 // pred_check
          %p468 = pneg %p396
        $region46: #{tpu_custom_call.1} parent=27 // pred_check_branch
          %470 = sbr.rel (%p468) target = $region48
        $region47: #{tpu_custom_call.1} parent=27 // pred_region
          %v471 = vld [vmem:[#allocation2] sm:$0xff]
          %v472 = vld [vmem:[#allocation2 + $0x8] sm:$0xff]
          %v473 = vld [vmem:[#allocation2 + $0x10] sm:$0xff]
          %v474 = vld [vmem:[#allocation2 + $0x18] sm:$0xff]
          %v475 = vld [vmem:[#allocation2 + $0x20] sm:$0xff]
          %v476 = vld [vmem:[#allocation2 + $0x28] sm:$0xff]
          %v477 = vld [vmem:[#allocation2 + $0x30] sm:$0xff]
          %v478 = vld [vmem:[#allocation2 + $0x38] sm:$0xff]
          %v479 = vld [vmem:[#allocation2 + $0x40] sm:$0xff]
          %v480 = vld [vmem:[#allocation2 + $0x48] sm:$0xff]
          %v481 = vld [vmem:[#allocation2 + $0x50] sm:$0xff]
          %v482 = vld [vmem:[#allocation2 + $0x58] sm:$0xff]
          %v483 = vld [vmem:[#allocation2 + $0x60] sm:$0xff]
          %v484 = vld [vmem:[#allocation2 + $0x68] sm:$0xff]
          %v485 = vld [vmem:[#allocation2 + $0x70] sm:$0xff]
          %v486 = vld [vmem:[#allocation2 + $0x78] sm:$0xff]
          %v487 = vmax.f32 %v471, 0.0
          %v488 = vmax.f32 %v472, 0.0
          %v489 = vmax.f32 %v473, 0.0
          %v490 = vmax.f32 %v474, 0.0
          %v491 = vmax.f32 %v475, 0.0
          %v492 = vmax.f32 %v476, 0.0
          %v493 = vmax.f32 %v477, 0.0
          %v494 = vmax.f32 %v478, 0.0
          %v495 = vmax.f32 %v479, 0.0
          %v496 = vmax.f32 %v480, 0.0
          %v497 = vmax.f32 %v481, 0.0
          %v498 = vmax.f32 %v482, 0.0
          %v499 = vmax.f32 %v483, 0.0
          %v500 = vmax.f32 %v484, 0.0
          %v501 = vmax.f32 %v485, 0.0
          %v502 = vmax.f32 %v486, 0.0
          %v503 = vpack.c.bf16 %v487, %v487
          %v504 = vpack.c.bf16 %v488, %v488
          %v505 = vpack.c.bf16 %v489, %v489
          %v506 = vpack.c.bf16 %v490, %v490
          %v507 = vpack.c.bf16 %v491, %v491
          %v508 = vpack.c.bf16 %v492, %v492
          %v509 = vpack.c.bf16 %v493, %v493
          %v510 = vpack.c.bf16 %v494, %v494
          %v511 = vpack.c.bf16 %v495, %v495
          %v512 = vpack.c.bf16 %v496, %v496
          %v513 = vpack.c.bf16 %v497, %v497
          %v514 = vpack.c.bf16 %v498, %v498
          %v515 = vpack.c.bf16 %v499, %v499
          %v516 = vpack.c.bf16 %v500, %v500
          %v517 = vpack.c.bf16 %v501, %v501
          %v518 = vpack.c.bf16 %v502, %v502
          %519 = vst [vmem:[%s215] sm:$0xf] %v503
          %520 = vst [vmem:[%s215 + $0x4] sm:$0xf] %v504
          %521 = vst [vmem:[%s215 + $0x8] sm:$0xf] %v505
          %522 = vst [vmem:[%s215 + $0xc] sm:$0xf] %v506
          %523 = vst [vmem:[%s215 + $0x10] sm:$0xf] %v507
          %524 = vst [vmem:[%s215 + $0x14] sm:$0xf] %v508
          %525 = vst [vmem:[%s215 + $0x18] sm:$0xf] %v509
          %526 = vst [vmem:[%s215 + $0x1c] sm:$0xf] %v510
          %527 = vst [vmem:[%s215 + $0x20] sm:$0xf] %v511
          %528 = vst [vmem:[%s215 + $0x24] sm:$0xf] %v512
          %529 = vst [vmem:[%s215 + $0x28] sm:$0xf] %v513
          %530 = vst [vmem:[%s215 + $0x2c] sm:$0xf] %v514
          %531 = vst [vmem:[%s215 + $0x30] sm:$0xf] %v515
          %532 = vst [vmem:[%s215 + $0x34] sm:$0xf] %v516
          %533 = vst [vmem:[%s215 + $0x38] sm:$0xf] %v517
          %534 = vst [vmem:[%s215 + $0x3c] sm:$0xf] %v518
        $region48: #{tpu_custom_call.1} parent=27 // pred_fallthru
          _
        %s535 = sand.u32 %s105, 1
        %s536 = scalar_lea.sflag [#allocation5], %s535
        %s537 = sand.u32 %s105, 1
        %s538 = smul.addr %s537, 64
        %s539 = scalar_lea.vmem [#allocation8], %s538
        // Predicated region
        $region49: #{tpu_custom_call.1} parent=27 // pred_check
          %p540 = pneg %p115
        $region50: #{tpu_custom_call.1} parent=27 // pred_check_branch
          %542 = sbr.rel (%p540) target = $region52
        $region51: #{tpu_custom_call.1} parent=27 // pred_region
          %s543 = smul.u32 16, %s25
          %545 = vsyncadd %s536, 0
          %s546 = sadd.s32 %s26, %s543
          %s547 = smul.addr %s546, 4
          %s548 = scalar_lea.hbm %s2, %s547
          %s549 = sshll.u32 %s539, 4
          %s550 = int_to_ptr.vmem [resolvable:$true] %s549
          %s551 = sshll.u32 %s548, 4
          %s552 = int_to_ptr.hbm [resolvable:$true] %s551
          %557 = dma.vmem_to_hbm [thread:$0]  %s550, 1024, %s552, %s536, 64, 64, 4
        $region52: #{tpu_custom_call.1} parent=27 // pred_fallthru
          _
      $region28: #{tpu_custom_call.1} parent=5 // pred_fallthru
        _
      %p558 = scmp.le.s32.totalorder 2, %s15
      // Predicated region
      $region53: #{tpu_custom_call.1} parent=5 // pred_check
        %p559 = pneg %p558
      $region54: #{tpu_custom_call.1} parent=5 // pred_check_branch
        %561 = sbr.rel (%p559) target = $region56
      $region55: #{tpu_custom_call.1} parent=5 // pred_region
        %s562 = ssub.s32 %s15, 2
        // Predicated region
        $region57: #{tpu_custom_call.1} parent=55 // pred_check
          %p563 = pneg %p121
        $region58: #{tpu_custom_call.1} parent=55 // pred_check_branch
          %565 = sbr.rel (%p563) target = $region60
        $region59: #{tpu_custom_call.1} parent=55 // pred_region
          %s566 = sand.u32 %s106, 1
          %s567 = scalar_lea.sflag [#allocation5], %s566
          %s568 = sand.u32 %s106, 1
          %s569 = smul.addr %s568, 64
          %s570 = scalar_lea.vmem [#allocation8], %s569
          %572 = dma.done %s567, 1024
        $region60: #{tpu_custom_call.1} parent=55 // pred_fallthru
          _
      $region56: #{tpu_custom_call.1} parent=5 // pred_fallthru
        _
    $region6: #{tpu_custom_call.1} parent=1 // loop_footer
      %s19 = sadd.s32 1, %s15
    $region7: #{tpu_custom_call.1} parent=1 // loop_footer_branch
      %14 = sbr.rel target = $region3
    $region8: #{tpu_custom_call.1} parent=1 // loop_exit
      _
    %573 = vsyncpa [#allocation4], 1
    %s574 = scalar_lea.sflag [#allocation4], 1
    %575 = vsyncpa %s574, 1
    %576 = vsyncpa [#allocation7], 1
    %577 = vsyncpa [#allocation5], 1
    %s578 = scalar_lea.sflag [#allocation5], 1
    %579 = vsyncpa %s578, 1

</llo_original>
